<compile_context>
chip_gen: v6e
topology: v6e:2x2x1
jax: 0.10.0
libtpu: 0.0.40
codegen_flags: <defaults>
</compile_context>

<pallas_src>
import functools

import jax
import jax.numpy as jnp
from jax import lax
from jax.experimental import pallas as pl
from jax.experimental.pallas import tpu as pltpu

KSIZE = 5
PAD = 2


def _cnn_encoder_kernel(x_ref, w1_ref, b1_ref, w2_ref, b2_ref, w3_ref, b3_ref,
                        o_ref, *, ksize):
    """Fused 3-layer CNN encoder for a block of `nb` batch elements.

    x_ref : (nb, C0, L)        f32 input block in the caller's NCL layout
    wX_ref: (K*Ci, Co)         bf16 im2col-ready conv weights
    bX_ref: (1, Co)            f32 biases
    o_ref : (nb, C3, L//8)     f32 output block, NCL layout (L//8 on lanes)
    """
    nb, c0, l0 = x_ref.shape
    c3, l_out = o_ref.shape[1], o_ref.shape[2]

    # ---- input: NCL f32 block -> flat (nb*L, C0), batch folded into matmul M ----
    if nb == 1:
        h = jnp.swapaxes(x_ref[0], 0, 1)                          # (L, C0) f32
    else:
        h = jnp.swapaxes(x_ref[...], 1, 2).reshape(nb * l0, c0)   # (nb*L, C0) f32

    def conv_relu_pool(h, w_ref, b_ref, l_in):
        # h: (m, Ci) f32 with m = nb * l_in; one layer:
        # Conv1d(k=5, pad=2) + bias + ReLU + MaxPool1d(2)  ->  (m // 2, Co) f32.
        m, ci = h.shape
        co = w_ref.shape[-1]

        # Zero pad along the flat length axis ("same" padding, in VMEM only).
        zpad = jnp.zeros((PAD, ci), h.dtype)
        hp = jnp.concatenate([zpad, h, zpad], axis=0)             # (m + K - 1, Ci) f32

        if m != l_in:  # nb > 1: taps must not read across sample boundaries
            loc = lax.broadcasted_iota(jnp.int32, (m, 1), 0) % l_in

        # im2col: K shifted views, cast to bf16 (halves the bytes of the big
        # materialized cols buffer), masked at sample boundaries, lane-concat.
        views = []
        for k in range(ksize):
            d = k - PAD
            v = hp[k:k + m, :].astype(jnp.bfloat16)               # (m, Ci) bf16
            if m != l_in and d != 0:
                valid = (loc >= -d) if d < 0 else (loc < l_in - d)
                v = jnp.where(valid, v, jnp.zeros_like(v))
            views.append(v)
        cols = jnp.concatenate(views, axis=-1)                    # (m, K*Ci) bf16

        # One MXU matmul per layer for the whole block; f32 accumulation.
        acc = jnp.dot(cols, w_ref[...],
                      preferred_element_type=jnp.float32)         # (m, Co) f32
        acc = jnp.maximum(acc + b_ref[...], 0.0)                  # bias + ReLU
        # MaxPool1d(2): pairs of consecutive rows never cross samples (l_in even).
        return jnp.max(acc.reshape(m // 2, 2, co), axis=1)        # (m//2, Co) f32

    h = conv_relu_pool(h, w1_ref, b1_ref, l0)                     # (nb*L/2, C1)
    h = conv_relu_pool(h, w2_ref, b2_ref, l0 // 2)                # (nb*L/4, C2)
    h = conv_relu_pool(h, w3_ref, b3_ref, l0 // 4)                # (nb*L/8, C3)

    # ---- output: store directly in the caller's NCL layout (L//8 on lanes) ----
    if nb == 1:
        o_ref[0] = jnp.swapaxes(h, 0, 1).astype(o_ref.dtype)      # (C3, L//8)
    else:
        h = h.reshape(nb, l_out, c3)
        o_ref[...] = jnp.swapaxes(h, 1, 2).astype(o_ref.dtype)    # (nb, C3, L//8)


def _pick_batch_block(n, c0, l, budget_bytes=2 << 20):
    """Largest divisor of n whose f32 input block stays under `budget_bytes`
    (in-kernel intermediates are a small multiple of this; double-buffered IO
    plus intermediates stay well under the 32 MiB vmem limit we request).
    Keeps >=2 grid steps (two v7x TensorCores) when that costs at most 2x block
    size; 1-TC v5e/v6e lose nothing either way at these sizes."""
    per_sample = max(1, c0 * l * 4)
    cap = max(1, budget_bytes // per_sample)
    divs = [d for d in range(1, n + 1) if n % d == 0]
    fit = [d for d in divs if d <= cap] or [1]
    nb = max(fit)
    two_step = [d for d in fit if n // d >= 2]
    if n // nb < 2 and two_step and max(two_step) * 2 >= nb:
        nb = max(two_step)
    return nb


def cnn_encoder_pallas(x_ncl, params, *, batch_block=None, interpret=False):
    """Full forward. x_ncl: (N, C, L) like PyTorch. Returns (N, 4*num_kernels, L//8)."""
    N, C0, L = x_ncl.shape
    assert L % 8 == 0, "L must be divisible by 8 (three MaxPool1d(2) stages)"
    (w1, b1), (w2, b2), (w3, b3) = params
    K = w1.shape[-1]
    assert K == KSIZE

    # (Co, Ci, K) -> (K*Ci, Co) bf16, row index k*Ci + ci (matches im2col order).
    def prep_w(w):
        co, ci, k = w.shape
        return jnp.transpose(w, (2, 1, 0)).reshape(k * ci, co).astype(jnp.bfloat16)

    def prep_b(b):
        return b.reshape(1, -1).astype(jnp.float32)

    w1p, w2p, w3p = prep_w(w1), prep_w(w2), prep_w(w3)
    b1p, b2p, b3p = prep_b(b1), prep_b(b2), prep_b(b3)
    C1, C2, C3 = w1.shape[0], w2.shape[0], w3.shape[0]

    # No wrapper-side transpose/cast: the kernel reads the f32 NCL layout directly.
    x_f32 = x_ncl.astype(jnp.float32)

    nb = batch_block if batch_block is not None else _pick_batch_block(N, C0, L)
    assert N % nb == 0, "batch must be divisible by the batch block"
    grid = (N // nb,)

    kernel = functools.partial(_cnn_encoder_kernel, ksize=K)
    out_ncl = pl.pallas_call(
        kernel,
        out_shape=jax.ShapeDtypeStruct((N, C3, L // 8), jnp.float32),
        grid_spec=pltpu.PrefetchScalarGridSpec(
            num_scalar_prefetch=0,
            grid=grid,
            in_specs=[
                pl.BlockSpec((nb, C0, L), lambda i: (i, 0, 0)),
                pl.BlockSpec((K * C0, C1), lambda i: (0, 0)),
                pl.BlockSpec((1, C1), lambda i: (0, 0)),
                pl.BlockSpec((K * C1, C2), lambda i: (0, 0)),
                pl.BlockSpec((1, C2), lambda i: (0, 0)),
                pl.BlockSpec((K * C2, C3), lambda i: (0, 0)),
                pl.BlockSpec((1, C3), lambda i: (0, 0)),
            ],
            out_specs=pl.BlockSpec((nb, C3, L // 8), lambda i: (i, 0, 0)),
        ),
        compiler_params=pltpu.CompilerParams(
            dimension_semantics=("parallel",),
            vmem_limit_bytes=32 * 1024 * 1024,
        ),
        interpret=interpret,
    )(x_f32, w1p, b1p, w2p, b2p, w3p, b3p)
    return out_ncl  # already in PyTorch NCL layout


def init_params(key, num_channels, num_kernels):
    """Deterministic Conv1d params, PyTorch weight layout (Co, Ci, K)."""
    dims = [
        (num_channels, num_kernels),
        (num_kernels, num_kernels * 2),
        (num_kernels * 2, num_kernels * 4),
    ]
    params = []
    for i, (ci, co) in enumerate(dims):
        kw, kb = jax.random.split(jax.random.fold_in(key, i))
        fan_in = ci * KSIZE
        bound = 1.0 / jnp.sqrt(fan_in)
        w = jax.random.uniform(kw, (co, ci, KSIZE), jnp.float32, -bound, bound)
        b = jax.random.uniform(kb, (co,), jnp.float32, -bound, bound)
        params.append((w, b))
    return params


def cnn_encoder_ref(x_ncl, params):
    """Pure-JAX f32 reference (lax conv) matching PyTorch semantics."""
    h = x_ncl
    for w, b in params:
        h = lax.conv_general_dilated(
            h, w, window_strides=(1,), padding=[(PAD, PAD)],
            dimension_numbers=("NCH", "OIH", "NCH"),
        ) + b[None, :, None]
        h = jnp.maximum(h, 0.0)
        N, C, L = h.shape
        h = jnp.max(h.reshape(N, C, L // 2, 2), axis=-1)
    return h


if __name__ == "__main__":
    key = jax.random.PRNGKey(0)
    batch, num_channels, num_kernels, L = 2, 4, 8, 16

    kx, kp = jax.random.split(key)
    x = jax.random.normal(kx, (batch, num_channels, L), jnp.float32)
    params = init_params(kp, num_channels, num_kernels)

    out = jax.block_until_ready(cnn_encoder_pallas(x, params))
    ref = cnn_encoder_ref(x, params)

    assert out.shape == (batch, num_kernels * 4, L // 8), out.shape
    # bf16 MXU inputs with f32 accumulation -> loosened tolerance vs. f32 reference.
    max_err = float(jnp.max(jnp.abs(out - ref)))
    assert jnp.allclose(out, ref, atol=5e-2, rtol=5e-2), max_err
    print("KERNEL_OK")
</pallas_src>

<mosaic_0001>
module attributes {stable_mosaic.version = 11 : i64} {
  func.func @_cnn_encoder_kernel(%arg0: i32, %arg1: memref<1x4x16xf32, #tpu.memory_space<vmem>>, %arg2: memref<20x8xbf16, #tpu.memory_space<vmem>>, %arg3: memref<1x8xf32, #tpu.memory_space<vmem>>, %arg4: memref<40x16xbf16, #tpu.memory_space<vmem>>, %arg5: memref<1x16xf32, #tpu.memory_space<vmem>>, %arg6: memref<80x32xbf16, #tpu.memory_space<vmem>>, %arg7: memref<1x32xf32, #tpu.memory_space<vmem>>, %arg8: memref<1x32x2xf32, #tpu.memory_space<vmem>>) attributes {dimension_semantics = [#tpu.dimension_semantics<parallel>], iteration_bounds = array<i64: 2>, scalar_prefetch = 0 : i64, scratch_operands = 0 : i64, tpu.core_type = #tpu.core_type<tc>, window_params = [{transform_indices = @transform_0, window_bounds = array<i64: 1, 4, 16>}, {pipeline_mode = #tpu.pipeline_mode<synchronous>, transform_indices = @transform_1, window_bounds = array<i64: 20, 8>}, {pipeline_mode = #tpu.pipeline_mode<synchronous>, transform_indices = @transform_2, window_bounds = array<i64: 1, 8>}, {pipeline_mode = #tpu.pipeline_mode<synchronous>, transform_indices = @transform_3, window_bounds = array<i64: 40, 16>}, {pipeline_mode = #tpu.pipeline_mode<synchronous>, transform_indices = @transform_4, window_bounds = array<i64: 1, 16>}, {pipeline_mode = #tpu.pipeline_mode<synchronous>, transform_indices = @transform_5, window_bounds = array<i64: 80, 32>}, {pipeline_mode = #tpu.pipeline_mode<synchronous>, transform_indices = @transform_6, window_bounds = array<i64: 1, 32>}, {transform_indices = @transform_7, window_bounds = array<i64: 1, 32, 2>}]} {
    %c0 = arith.constant 0 : index
    %c0_0 = arith.constant 0 : index
    %c0_1 = arith.constant 0 : index
    %0 = vector.load %arg1[%c0, %c0_0, %c0_1] : memref<1x4x16xf32, #tpu.memory_space<vmem>>, vector<1x4x16xf32>
    %1 = vector.shape_cast %0 : vector<1x4x16xf32> to vector<4x16xf32>
    %2 = tpu.transpose %1, [1, 0] : vector<4x16xf32> -> vector<16x4xf32>
    %cst = arith.constant 0.000000e+00 : f32
    %3 = vector.broadcast %cst : f32 to vector<2x4xf32>
    %4 = tpu.concatenate %3, %2, %3 in 0 : vector<2x4xf32>, vector<16x4xf32>, vector<2x4xf32> -> vector<20x4xf32>
    %5 = vector.extract_strided_slice %4 {offsets = [0, 0], sizes = [16, 4], strides = [1, 1]} : vector<20x4xf32> to vector<16x4xf32>
    %6 = arith.truncf %5 : vector<16x4xf32> to vector<16x4xbf16>
    %7 = vector.extract_strided_slice %4 {offsets = [1, 0], sizes = [16, 4], strides = [1, 1]} : vector<20x4xf32> to vector<16x4xf32>
    %8 = arith.truncf %7 : vector<16x4xf32> to vector<16x4xbf16>
    %9 = vector.extract_strided_slice %4 {offsets = [2, 0], sizes = [16, 4], strides = [1, 1]} : vector<20x4xf32> to vector<16x4xf32>
    %10 = arith.truncf %9 : vector<16x4xf32> to vector<16x4xbf16>
    %11 = vector.extract_strided_slice %4 {offsets = [3, 0], sizes = [16, 4], strides = [1, 1]} : vector<20x4xf32> to vector<16x4xf32>
    %12 = arith.truncf %11 : vector<16x4xf32> to vector<16x4xbf16>
    %13 = vector.extract_strided_slice %4 {offsets = [4, 0], sizes = [16, 4], strides = [1, 1]} : vector<20x4xf32> to vector<16x4xf32>
    %14 = arith.truncf %13 : vector<16x4xf32> to vector<16x4xbf16>
    %15 = tpu.concatenate %6, %8, %10, %12, %14 in 1 : vector<16x4xbf16>, vector<16x4xbf16>, vector<16x4xbf16>, vector<16x4xbf16>, vector<16x4xbf16> -> vector<16x20xbf16>
    %c0_2 = arith.constant 0 : index
    %c0_3 = arith.constant 0 : index
    %16 = vector.load %arg2[%c0_2, %c0_3] : memref<20x8xbf16, #tpu.memory_space<vmem>>, vector<20x8xbf16>
    %cst_4 = arith.constant dense<0.000000e+00> : vector<16x8xf32>
    %17 = tpu.matmul %15, %16, %cst_4 {dimension_numbers = #tpu.dot_dimension_numbers<[1], [0], [0], [1], [0, 0, 1, 1], [], []>} : vector<16x20xbf16>, vector<20x8xbf16>, vector<16x8xf32> -> vector<16x8xf32>
    %c0_5 = arith.constant 0 : index
    %c0_6 = arith.constant 0 : index
    %18 = vector.load %arg3[%c0_5, %c0_6] : memref<1x8xf32, #tpu.memory_space<vmem>>, vector<1x8xf32>
    %19 = vector.broadcast %18 : vector<1x8xf32> to vector<16x8xf32>
    %20 = arith.addf %17, %19 : vector<16x8xf32>
    %cst_7 = arith.constant 0.000000e+00 : f32
    %21 = vector.broadcast %cst_7 : f32 to vector<16x8xf32>
    %22 = arith.maximumf %20, %21 : vector<16x8xf32>
    %23 = vector.shape_cast %22 : vector<16x8xf32> to vector<8x2x8xf32>
    %cst_8 = arith.constant dense<0xFF800000> : vector<8x8xf32>
    %24 = vector.multi_reduction <maximumf>, %23, %cst_8 [1] : vector<8x2x8xf32> to vector<8x8xf32>
    %cst_9 = arith.constant 0.000000e+00 : f32
    %25 = vector.broadcast %cst_9 : f32 to vector<2x8xf32>
    %26 = tpu.concatenate %25, %24, %25 in 0 : vector<2x8xf32>, vector<8x8xf32>, vector<2x8xf32> -> vector<12x8xf32>
    %27 = vector.extract_strided_slice %26 {offsets = [0, 0], sizes = [8, 8], strides = [1, 1]} : vector<12x8xf32> to vector<8x8xf32>
    %28 = arith.truncf %27 : vector<8x8xf32> to vector<8x8xbf16>
    %29 = vector.extract_strided_slice %26 {offsets = [1, 0], sizes = [8, 8], strides = [1, 1]} : vector<12x8xf32> to vector<8x8xf32>
    %30 = arith.truncf %29 : vector<8x8xf32> to vector<8x8xbf16>
    %31 = vector.extract_strided_slice %26 {offsets = [2, 0], sizes = [8, 8], strides = [1, 1]} : vector<12x8xf32> to vector<8x8xf32>
    %32 = arith.truncf %31 : vector<8x8xf32> to vector<8x8xbf16>
    %33 = vector.extract_strided_slice %26 {offsets = [3, 0], sizes = [8, 8], strides = [1, 1]} : vector<12x8xf32> to vector<8x8xf32>
    %34 = arith.truncf %33 : vector<8x8xf32> to vector<8x8xbf16>
    %35 = vector.extract_strided_slice %26 {offsets = [4, 0], sizes = [8, 8], strides = [1, 1]} : vector<12x8xf32> to vector<8x8xf32>
    %36 = arith.truncf %35 : vector<8x8xf32> to vector<8x8xbf16>
    %37 = tpu.concatenate %28, %30, %32, %34, %36 in 1 : vector<8x8xbf16>, vector<8x8xbf16>, vector<8x8xbf16>, vector<8x8xbf16>, vector<8x8xbf16> -> vector<8x40xbf16>
    %c0_10 = arith.constant 0 : index
    %c0_11 = arith.constant 0 : index
    %38 = vector.load %arg4[%c0_10, %c0_11] : memref<40x16xbf16, #tpu.memory_space<vmem>>, vector<40x16xbf16>
    %cst_12 = arith.constant dense<0.000000e+00> : vector<8x16xf32>
    %39 = tpu.matmul %37, %38, %cst_12 {dimension_numbers = #tpu.dot_dimension_numbers<[1], [0], [0], [1], [0, 0, 1, 1], [], []>} : vector<8x40xbf16>, vector<40x16xbf16>, vector<8x16xf32> -> vector<8x16xf32>
    %c0_13 = arith.constant 0 : index
    %c0_14 = arith.constant 0 : index
    %40 = vector.load %arg5[%c0_13, %c0_14] : memref<1x16xf32, #tpu.memory_space<vmem>>, vector<1x16xf32>
    %41 = vector.broadcast %40 : vector<1x16xf32> to vector<8x16xf32>
    %42 = arith.addf %39, %41 : vector<8x16xf32>
    %cst_15 = arith.constant 0.000000e+00 : f32
    %43 = vector.broadcast %cst_15 : f32 to vector<8x16xf32>
    %44 = arith.maximumf %42, %43 : vector<8x16xf32>
    %45 = vector.shape_cast %44 : vector<8x16xf32> to vector<4x2x16xf32>
    %cst_16 = arith.constant dense<0xFF800000> : vector<4x16xf32>
    %46 = vector.multi_reduction <maximumf>, %45, %cst_16 [1] : vector<4x2x16xf32> to vector<4x16xf32>
    %cst_17 = arith.constant 0.000000e+00 : f32
    %47 = vector.broadcast %cst_17 : f32 to vector<2x16xf32>
    %48 = tpu.concatenate %47, %46, %47 in 0 : vector<2x16xf32>, vector<4x16xf32>, vector<2x16xf32> -> vector<8x16xf32>
    %49 = vector.extract_strided_slice %48 {offsets = [0, 0], sizes = [4, 16], strides = [1, 1]} : vector<8x16xf32> to vector<4x16xf32>
    %50 = arith.truncf %49 : vector<4x16xf32> to vector<4x16xbf16>
    %51 = vector.extract_strided_slice %48 {offsets = [1, 0], sizes = [4, 16], strides = [1, 1]} : vector<8x16xf32> to vector<4x16xf32>
    %52 = arith.truncf %51 : vector<4x16xf32> to vector<4x16xbf16>
    %53 = vector.extract_strided_slice %48 {offsets = [2, 0], sizes = [4, 16], strides = [1, 1]} : vector<8x16xf32> to vector<4x16xf32>
    %54 = arith.truncf %53 : vector<4x16xf32> to vector<4x16xbf16>
    %55 = vector.extract_strided_slice %48 {offsets = [3, 0], sizes = [4, 16], strides = [1, 1]} : vector<8x16xf32> to vector<4x16xf32>
    %56 = arith.truncf %55 : vector<4x16xf32> to vector<4x16xbf16>
    %57 = vector.extract_strided_slice %48 {offsets = [4, 0], sizes = [4, 16], strides = [1, 1]} : vector<8x16xf32> to vector<4x16xf32>
    %58 = arith.truncf %57 : vector<4x16xf32> to vector<4x16xbf16>
    %59 = tpu.concatenate %50, %52, %54, %56, %58 in 1 : vector<4x16xbf16>, vector<4x16xbf16>, vector<4x16xbf16>, vector<4x16xbf16>, vector<4x16xbf16> -> vector<4x80xbf16>
    %c0_18 = arith.constant 0 : index
    %c0_19 = arith.constant 0 : index
    %60 = vector.load %arg6[%c0_18, %c0_19] : memref<80x32xbf16, #tpu.memory_space<vmem>>, vector<80x32xbf16>
    %cst_20 = arith.constant dense<0.000000e+00> : vector<4x32xf32>
    %61 = tpu.matmul %59, %60, %cst_20 {dimension_numbers = #tpu.dot_dimension_numbers<[1], [0], [0], [1], [0, 0, 1, 1], [], []>} : vector<4x80xbf16>, vector<80x32xbf16>, vector<4x32xf32> -> vector<4x32xf32>
    %c0_21 = arith.constant 0 : index
    %c0_22 = arith.constant 0 : index
    %62 = vector.load %arg7[%c0_21, %c0_22] : memref<1x32xf32, #tpu.memory_space<vmem>>, vector<1x32xf32>
    %63 = vector.broadcast %62 : vector<1x32xf32> to vector<4x32xf32>
    %64 = arith.addf %61, %63 : vector<4x32xf32>
    %cst_23 = arith.constant 0.000000e+00 : f32
    %65 = vector.broadcast %cst_23 : f32 to vector<4x32xf32>
    %66 = arith.maximumf %64, %65 : vector<4x32xf32>
    %67 = vector.shape_cast %66 : vector<4x32xf32> to vector<2x2x32xf32>
    %cst_24 = arith.constant dense<0xFF800000> : vector<2x32xf32>
    %68 = vector.multi_reduction <maximumf>, %67, %cst_24 [1] : vector<2x2x32xf32> to vector<2x32xf32>
    %69 = tpu.transpose %68, [1, 0] : vector<2x32xf32> -> vector<32x2xf32>
    %c0_25 = arith.constant 0 : index
    %c0_26 = arith.constant 0 : index
    %c0_27 = arith.constant 0 : index
    %70 = vector.load %arg8[%c0_25, %c0_26, %c0_27] : memref<1x32x2xf32, #tpu.memory_space<vmem>>, vector<1x32x2xf32>
    %71 = vector.shape_cast %70 : vector<1x32x2xf32> to vector<32x2xf32>
    %72 = vector.shape_cast %69 : vector<32x2xf32> to vector<1x32x2xf32>
    tpu.vector_store %arg8[%c0_25, %c0_26, %c0_27], %72 {strides = array<i32>} : memref<1x32x2xf32, #tpu.memory_space<vmem>>, vector<1x32x2xf32>,
    return
  }
  func.func @transform_0(%arg0: i32) -> (i32, i32, i32) {
    %c0_i32 = arith.constant 0 : i32
    %c0_i32_0 = arith.constant 0 : i32
    %c0_i32_1 = arith.constant 0 : i32
    return %arg0, %c0_i32, %c0_i32_0 : i32, i32, i32
  }
  func.func @transform_1(%arg0: i32) -> (i32, i32) {
    %c0_i32 = arith.constant 0 : i32
    %c0_i32_0 = arith.constant 0 : i32
    %c0_i32_1 = arith.constant 0 : i32
    return %c0_i32, %c0_i32_0 : i32, i32
  }
  func.func @transform_2(%arg0: i32) -> (i32, i32) {
    %c0_i32 = arith.constant 0 : i32
    %c0_i32_0 = arith.constant 0 : i32
    %c0_i32_1 = arith.constant 0 : i32
    return %c0_i32, %c0_i32_0 : i32, i32
  }
  func.func @transform_3(%arg0: i32) -> (i32, i32) {
    %c0_i32 = arith.constant 0 : i32
    %c0_i32_0 = arith.constant 0 : i32
    %c0_i32_1 = arith.constant 0 : i32
    return %c0_i32, %c0_i32_0 : i32, i32
  }
  func.func @transform_4(%arg0: i32) -> (i32, i32) {
    %c0_i32 = arith.constant 0 : i32
    %c0_i32_0 = arith.constant 0 : i32
    %c0_i32_1 = arith.constant 0 : i32
    return %c0_i32, %c0_i32_0 : i32, i32
  }
  func.func @transform_5(%arg0: i32) -> (i32, i32) {
    %c0_i32 = arith.constant 0 : i32
    %c0_i32_0 = arith.constant 0 : i32
    %c0_i32_1 = arith.constant 0 : i32
    return %c0_i32, %c0_i32_0 : i32, i32
  }
  func.func @transform_6(%arg0: i32) -> (i32, i32) {
    %c0_i32 = arith.constant 0 : i32
    %c0_i32_0 = arith.constant 0 : i32
    %c0_i32_1 = arith.constant 0 : i32
    return %c0_i32, %c0_i32_0 : i32, i32
  }
  func.func @transform_7(%arg0: i32) -> (i32, i32, i32) {
    %c0_i32 = arith.constant 0 : i32
    %c0_i32_0 = arith.constant 0 : i32
    %c0_i32_1 = arith.constant 0 : i32
    return %arg0, %c0_i32, %c0_i32_0 : i32, i32, i32
  }
}

</mosaic_0001>

<llo_original>
// kernel: tpu_custom_call.1
$region0: #{tpu_custom_call.1}
  #allocation0 [shape = 'u32[]', space=smem, size = 0x4, offset = 0x4, fixed_abs, tag = 'smem constant byte address 0x4 - core index']
  #allocation1 [shape = 'u32[144,128]{1,0:T(1,128)}', space=vmem, size = 0x12000, scoped, tag = 'internal scratch']
  %s0 = inlined_call_operand.vmem [shape: f32[2,4,16], index: 0, kind: input, shape index: {}]
  %s1 = inlined_call_operand.vmem [shape: bf16[20,8], index: 1, kind: input, shape index: {}]
  %s2 = inlined_call_operand.vmem [shape: f32[1,8], index: 2, kind: input, shape index: {}]
  %s3 = inlined_call_operand.vmem [shape: bf16[40,16], index: 3, kind: input, shape index: {}]
  %s4 = inlined_call_operand.vmem [shape: f32[1,16], index: 4, kind: input, shape index: {}]
  %s5 = inlined_call_operand.vmem [shape: bf16[80,32], index: 5, kind: input, shape index: {}]
  %s6 = inlined_call_operand.vmem [shape: f32[1,32], index: 6, kind: input, shape index: {}]
  %s7 = inlined_call_operand.vmem [shape: f32[2,32,2], index: 7, kind: output, shape index: {}]
  %s8 = sld [smem:[#allocation0]]
  $region61: #{tpu_custom_call.1} parent=0
    _
  %s10 = ssub.s32 1, %s8
  %s11 = scalar_select 0, %s10, %s8
  loop: start=0, step=1, limit=4
  $region2: #{tpu_custom_call.1} parent=0 // loop_pre_header
    _
  $region3: #{tpu_custom_call.1} parent=0 // loop_header
    %s13 = sphi 0, %s17
    %p14 = scmp.ge.s32.totalorder %s13, 4
    %s23 = sphi 0, %s25
    %s26 = sphi 0, %s23
    %s27 = sphi 0, %s26
    %s43 = sphi 0, %s27
    %s47 = sphi 0, %s47
    %s49 = sphi 0, %s47
    %s50 = sphi 0, %s49
    %s64 = sphi 0, %s50
    %s68 = sphi 0, %s68
    %s70 = sphi 0, %s68
    %s71 = sphi 0, %s70
    %s85 = sphi 0, %s71
    %s89 = sphi 0, %s89
    %s91 = sphi 0, %s89
    %s92 = sphi 0, %s91
    %s106 = sphi 0, %s92
    %s110 = sphi 0, %s110
    %s112 = sphi 0, %s110
    %s113 = sphi 0, %s112
    %s127 = sphi 0, %s113
    %s131 = sphi 0, %s131
    %s133 = sphi 0, %s131
    %s134 = sphi 0, %s133
    %s148 = sphi 0, %s134
    %s152 = sphi 0, %s152
    %s154 = sphi 0, %s152
    %s155 = sphi 0, %s154
    %s169 = sphi 0, %s155
    %s175 = sphi 0, %s177
    %s178 = sphi 0, %s175
    %s179 = sphi 0, %s178
    %s195 = sphi 0, %s179
  $region4: #{tpu_custom_call.1} parent=0 // loop_header_branch
    %16 = sbr.rel (%p14) target = $region8
  $region5: #{tpu_custom_call.1} parent=0 // loop_body
    %s18 = ssub.s32 %s13, 1
    %s19 = ssub.s32 %s13, 2
    %s20 = sadd.s32 %s13, 1
    %s21 = ssub.s32 %s13, %s20
    %p22 = scmp.eq.s32.totalorder %s21, 0
    %s24 = sadd.s32 %s23, 1
    %s25 = scalar_select %p22, %s23, %s24
    %p28 = pneg %p22
    %p29 = scmp.eq.s32.totalorder %s13, 1
    %p30 = por %p28, %p29
    %p31 = scmp.ne.s32.totalorder %s23, %s26
    %p32 = scmp.eq.s32.totalorder %s13, 0
    %p33 = por %p31, %p32
    %p34 = scmp.ne.s32.totalorder %s23, %s26
    %p35 = scmp.eq.s32.totalorder %s18, 1
    %p36 = por %p34, %p35
    %p37 = scmp.ne.s32.totalorder %s26, %s27
    %p38 = scmp.eq.s32.totalorder %s18, 0
    %p39 = por %p37, %p38
    %p40 = scmp.ne.s32.totalorder %s26, %s27
    %p41 = scmp.eq.s32.totalorder %s19, 1
    %p42 = por %p40, %p41
    %p44 = scmp.ne.s32.totalorder %s27, %s43
    %p45 = scmp.eq.s32.totalorder %s19, 0
    %p46 = por %p44, %p45
    %s48 = sadd.s32 %s47, 1
    %p51 = scmp.eq.s32.totalorder %s13, 1
    %p52 = scmp.ne.s32.totalorder %s47, %s49
    %p53 = scmp.eq.s32.totalorder %s13, 0
    %p54 = por %p52, %p53
    %p55 = scmp.ne.s32.totalorder %s47, %s49
    %p56 = scmp.eq.s32.totalorder %s18, 1
    %p57 = por %p55, %p56
    %p58 = scmp.ne.s32.totalorder %s49, %s50
    %p59 = scmp.eq.s32.totalorder %s18, 0
    %p60 = por %p58, %p59
    %p61 = scmp.ne.s32.totalorder %s49, %s50
    %p62 = scmp.eq.s32.totalorder %s19, 1
    %p63 = por %p61, %p62
    %p65 = scmp.ne.s32.totalorder %s50, %s64
    %p66 = scmp.eq.s32.totalorder %s19, 0
    %p67 = por %p65, %p66
    %s69 = sadd.s32 %s68, 1
    %p72 = scmp.eq.s32.totalorder %s13, 1
    %p73 = scmp.ne.s32.totalorder %s68, %s70
    %p74 = scmp.eq.s32.totalorder %s13, 0
    %p75 = por %p73, %p74
    %p76 = scmp.ne.s32.totalorder %s68, %s70
    %p77 = scmp.eq.s32.totalorder %s18, 1
    %p78 = por %p76, %p77
    %p79 = scmp.ne.s32.totalorder %s70, %s71
    %p80 = scmp.eq.s32.totalorder %s18, 0
    %p81 = por %p79, %p80
    %p82 = scmp.ne.s32.totalorder %s70, %s71
    %p83 = scmp.eq.s32.totalorder %s19, 1
    %p84 = por %p82, %p83
    %p86 = scmp.ne.s32.totalorder %s71, %s85
    %p87 = scmp.eq.s32.totalorder %s19, 0
    %p88 = por %p86, %p87
    %s90 = sadd.s32 %s89, 1
    %p93 = scmp.eq.s32.totalorder %s13, 1
    %p94 = scmp.ne.s32.totalorder %s89, %s91
    %p95 = scmp.eq.s32.totalorder %s13, 0
    %p96 = por %p94, %p95
    %p97 = scmp.ne.s32.totalorder %s89, %s91
    %p98 = scmp.eq.s32.totalorder %s18, 1
    %p99 = por %p97, %p98
    %p100 = scmp.ne.s32.totalorder %s91, %s92
    %p101 = scmp.eq.s32.totalorder %s18, 0
    %p102 = por %p100, %p101
    %p103 = scmp.ne.s32.totalorder %s91, %s92
    %p104 = scmp.eq.s32.totalorder %s19, 1
    %p105 = por %p103, %p104
    %p107 = scmp.ne.s32.totalorder %s92, %s106
    %p108 = scmp.eq.s32.totalorder %s19, 0
    %p109 = por %p107, %p108
    %s111 = sadd.s32 %s110, 1
    %p114 = scmp.eq.s32.totalorder %s13, 1
    %p115 = scmp.ne.s32.totalorder %s110, %s112
    %p116 = scmp.eq.s32.totalorder %s13, 0
    %p117 = por %p115, %p116
    %p118 = scmp.ne.s32.totalorder %s110, %s112
    %p119 = scmp.eq.s32.totalorder %s18, 1
    %p120 = por %p118, %p119
    %p121 = scmp.ne.s32.totalorder %s112, %s113
    %p122 = scmp.eq.s32.totalorder %s18, 0
    %p123 = por %p121, %p122
    %p124 = scmp.ne.s32.totalorder %s112, %s113
    %p125 = scmp.eq.s32.totalorder %s19, 1
    %p126 = por %p124, %p125
    %p128 = scmp.ne.s32.totalorder %s113, %s127
    %p129 = scmp.eq.s32.totalorder %s19, 0
    %p130 = por %p128, %p129
    %s132 = sadd.s32 %s131, 1
    %p135 = scmp.eq.s32.totalorder %s13, 1
    %p136 = scmp.ne.s32.totalorder %s131, %s133
    %p137 = scmp.eq.s32.totalorder %s13, 0
    %p138 = por %p136, %p137
    %p139 = scmp.ne.s32.totalorder %s131, %s133
    %p140 = scmp.eq.s32.totalorder %s18, 1
    %p141 = por %p139, %p140
    %p142 = scmp.ne.s32.totalorder %s133, %s134
    %p143 = scmp.eq.s32.totalorder %s18, 0
    %p144 = por %p142, %p143
    %p145 = scmp.ne.s32.totalorder %s133, %s134
    %p146 = scmp.eq.s32.totalorder %s19, 1
    %p147 = por %p145, %p146
    %p149 = scmp.ne.s32.totalorder %s134, %s148
    %p150 = scmp.eq.s32.totalorder %s19, 0
    %p151 = por %p149, %p150
    %s153 = sadd.s32 %s152, 1
    %p156 = scmp.eq.s32.totalorder %s13, 1
    %p157 = scmp.ne.s32.totalorder %s152, %s154
    %p158 = scmp.eq.s32.totalorder %s13, 0
    %p159 = por %p157, %p158
    %p160 = scmp.ne.s32.totalorder %s152, %s154
    %p161 = scmp.eq.s32.totalorder %s18, 1
    %p162 = por %p160, %p161
    %p163 = scmp.ne.s32.totalorder %s154, %s155
    %p164 = scmp.eq.s32.totalorder %s18, 0
    %p165 = por %p163, %p164
    %p166 = scmp.ne.s32.totalorder %s154, %s155
    %p167 = scmp.eq.s32.totalorder %s19, 1
    %p168 = por %p166, %p167
    %p170 = scmp.ne.s32.totalorder %s155, %s169
    %p171 = scmp.eq.s32.totalorder %s19, 0
    %p172 = por %p170, %p171
    %s173 = ssub.s32 %s13, %s20
    %p174 = scmp.eq.s32.totalorder %s173, 0
    %s176 = sadd.s32 %s175, 1
    %s177 = scalar_select %p174, %s175, %s176
    %p180 = pneg %p174
    %p181 = scmp.eq.s32.totalorder %s13, 1
    %p182 = por %p180, %p181
    %p183 = scmp.ne.s32.totalorder %s175, %s178
    %p184 = scmp.eq.s32.totalorder %s13, 0
    %p185 = por %p183, %p184
    %p186 = scmp.ne.s32.totalorder %s175, %s178
    %p187 = scmp.eq.s32.totalorder %s18, 1
    %p188 = por %p186, %p187
    %p189 = scmp.ne.s32.totalorder %s178, %s179
    %p190 = scmp.eq.s32.totalorder %s18, 0
    %p191 = por %p189, %p190
    %p192 = scmp.ne.s32.totalorder %s178, %s179
    %p193 = scmp.eq.s32.totalorder %s19, 1
    %p194 = por %p192, %p193
    %p196 = scmp.ne.s32.totalorder %s179, %s195
    %p197 = scmp.eq.s32.totalorder %s19, 0
    %p198 = por %p196, %p197
    %p199 = scmp.le.s32.totalorder 1, %s13
    %p200 = scmp.lt.s32.totalorder %s13, 3
    %p201 = pnand %p199, %p200
    %p202 = pneg %p201
    // Predicated region
    $region9: #{tpu_custom_call.1} parent=5 // pred_check
      _
    $region10: #{tpu_custom_call.1} parent=5 // pred_check_branch
      %204 = sbr.rel (%p201) target = $region12
    $region11: #{tpu_custom_call.1} parent=5 // pred_region
      %s205 = ssub.s32 %s13, 1
      // Predicated region
      $region13: #{tpu_custom_call.1} parent=11 // pred_check
        %p206 = pneg %p60
      $region14: #{tpu_custom_call.1} parent=11 // pred_check_branch
        %208 = sbr.rel (%p206) target = $region16
      $region15: #{tpu_custom_call.1} parent=11 // pred_region
        _
      $region16: #{tpu_custom_call.1} parent=11 // pred_fallthru
        _
      // Predicated region
      $region17: #{tpu_custom_call.1} parent=11 // pred_check
        %p209 = pneg %p81
      $region18: #{tpu_custom_call.1} parent=11 // pred_check_branch
        %211 = sbr.rel (%p209) target = $region20
      $region19: #{tpu_custom_call.1} parent=11 // pred_region
        _
      $region20: #{tpu_custom_call.1} parent=11 // pred_fallthru
        _
      // Predicated region
      $region21: #{tpu_custom_call.1} parent=11 // pred_check
        %p212 = pneg %p102
      $region22: #{tpu_custom_call.1} parent=11 // pred_check_branch
        %214 = sbr.rel (%p212) target = $region24
      $region23: #{tpu_custom_call.1} parent=11 // pred_region
        _
      $region24: #{tpu_custom_call.1} parent=11 // pred_fallthru
        _
      // Predicated region
      $region25: #{tpu_custom_call.1} parent=11 // pred_check
        %p215 = pneg %p123
      $region26: #{tpu_custom_call.1} parent=11 // pred_check_branch
        %217 = sbr.rel (%p215) target = $region28
      $region27: #{tpu_custom_call.1} parent=11 // pred_region
        _
      $region28: #{tpu_custom_call.1} parent=11 // pred_fallthru
        _
      // Predicated region
      $region29: #{tpu_custom_call.1} parent=11 // pred_check
        %p218 = pneg %p144
      $region30: #{tpu_custom_call.1} parent=11 // pred_check_branch
        %220 = sbr.rel (%p218) target = $region32
      $region31: #{tpu_custom_call.1} parent=11 // pred_region
        _
      $region32: #{tpu_custom_call.1} parent=11 // pred_fallthru
        _
      // Predicated region
      $region33: #{tpu_custom_call.1} parent=11 // pred_check
        %p221 = pneg %p165
      $region34: #{tpu_custom_call.1} parent=11 // pred_check_branch
        %223 = sbr.rel (%p221) target = $region36
      $region35: #{tpu_custom_call.1} parent=11 // pred_region
        _
      $region36: #{tpu_custom_call.1} parent=11 // pred_fallthru
        _
    $region12: #{tpu_custom_call.1} parent=5 // pred_fallthru
      _
    %p224 = scmp.lt.s32.totalorder %s13, 2
    // Predicated region
    $region37: #{tpu_custom_call.1} parent=5 // pred_check
      %p225 = pneg %p224
    $region38: #{tpu_custom_call.1} parent=5 // pred_check_branch
      %227 = sbr.rel (%p225) target = $region40
    $region39: #{tpu_custom_call.1} parent=5 // pred_region
      // Predicated region
      $region41: #{tpu_custom_call.1} parent=39 // pred_check
        %p228 = pneg %p33
      $region42: #{tpu_custom_call.1} parent=39 // pred_check_branch
        %230 = sbr.rel (%p228) target = $region44
      $region43: #{tpu_custom_call.1} parent=39 // pred_region
        %p231 = scmp.lt.s32.totalorder %s13, 1
        %s232 = scalar_select %p231, %s13, 1
        %s233 = smul.addr %s232, 4
        %s234 = scalar_lea.vmem %s0, %s233
      $region44: #{tpu_custom_call.1} parent=39 // pred_fallthru
        _
    $region40: #{tpu_custom_call.1} parent=5 // pred_fallthru
      _
    %p235 = scmp.le.s32.totalorder 1, %s13
    %p236 = scmp.lt.s32.totalorder %s13, 3
    %p237 = pnand %p235, %p236
    %p238 = pneg %p237
    // Predicated region
    $region45: #{tpu_custom_call.1} parent=5 // pred_check
      _
    $region46: #{tpu_custom_call.1} parent=5 // pred_check_branch
      %240 = sbr.rel (%p237) target = $region48
    $region47: #{tpu_custom_call.1} parent=5 // pred_region
      %s241 = ssub.s32 %s13, 1
      %p242 = scmp.lt.s32.totalorder %s18, 1
      %s243 = scalar_select %p242, %s18, 1
      %s244 = smul.addr %s243, 4
      %s245 = scalar_lea.vmem %s0, %s244
      %p246 = pneg %p39
      %p247 = pneg %p36
      %p248 = pneg %p60
      %p249 = pneg %p57
      %p250 = pneg %p81
      %p251 = pneg %p78
      %p252 = pneg %p102
      %p253 = pneg %p99
      %p254 = pneg %p123
      %p255 = pneg %p120
      %p256 = pneg %p144
      %p257 = pneg %p141
      %p258 = pneg %p165
      %p259 = pneg %p162
      %p260 = pneg %p191
      %p261 = pneg %p188
      %p262 = scmp.lt.s32.totalorder %s18, 1
      %s263 = scalar_select %p262, %s18, 1
      %s264 = smul.addr %s263, 4
      %s265 = smul.addr %s264, 8
      %s266 = scalar_lea.vmem %s7, %s265
      %p267 = scmp.lt.s32.totalorder %s18, 1
      %s268 = scalar_select %p267, %s18, 1
      %s269 = smul.addr %s268, 4
      %s270 = scalar_lea.vmem %s0, %s269
      %p271 = scmp.lt.s32.totalorder %s18, 1
      %s272 = scalar_select %p271, %s18, 1
      %s273 = smul.addr %s272, 4
      %s274 = smul.addr %s273, 8
      %s275 = scalar_lea.vmem %s7, %s274
      %v277 = vld [vmem:[%s270] sm:$0xf]
      %278 = vxpose.xlu0.b32.start [1/16] %v277, 128
      %279 = vxpose.xlu0.b32.cont [2/16] 0.0, 128
      %280 = vxpose.xlu0.b32.cont [3/16] 0.0, 128
      %281 = vxpose.xlu0.b32.cont [4/16] 0.0, 128
      %282 = vxpose.xlu0.b32.cont [5/16] 0.0, 128
      %283 = vxpose.xlu0.b32.cont [6/16] 0.0, 128
      %284 = vxpose.xlu0.b32.cont [7/16] 0.0, 128
      %285 = vxpose.xlu0.b32.cont [8/16] 0.0, 128
      %286 = vxpose.xlu0.b32.cont [9/16] 0.0, 128
      %287 = vxpose.xlu0.b32.cont [10/16] 0.0, 128
      %288 = vxpose.xlu0.b32.cont [11/16] 0.0, 128
      %289 = vxpose.xlu0.b32.cont [12/16] 0.0, 128
      %290 = vxpose.xlu0.b32.cont [13/16] 0.0, 128
      %291 = vxpose.xlu0.b32.cont [14/16] 0.0, 128
      %292 = vxpose.xlu0.b32.cont [15/16] 0.0, 128
      %293 = vxpose.xlu0.b32.end [16/16] 0.0, 128
      %v294 = vpop.trf.xlu0
      %v295 = vpop.trf.xlu0
      %v296 = vpop.trf.xlu0
      %v297 = vpop.trf.xlu0
      %v298 = vpop.trf.xlu0
      %v299 = vpop.trf.xlu0
      %v300 = vpop.trf.xlu0
      %v301 = vpop.trf.xlu0
      %v302 = vpop.trf.xlu0
      %v303 = vpop.trf.xlu0
      %v304 = vpop.trf.xlu0
      %v305 = vpop.trf.xlu0
      %v306 = vpop.trf.xlu0
      %v307 = vpop.trf.xlu0
      %v308 = vpop.trf.xlu0
      %v309 = vpop.trf.xlu0
      %vm312 = vcmask 1041408
      %v313 = vrot.slane %v294, 6
      %v314 = vrot.slane %v295, 6
      %v315 = vsel %vm312, %v313, %v314
      %v319 = vsel %vm312, 0.0, %v313
      %v320 = vsel %vm312, %v314, 0.0
      %v321 = vpack.c.bf16 %v315, %v319
      %v322 = vpack.c.bf16 %v320, %v320
      %vm323 = vsmask.f32 7424
      %v325 = vshrl.u32 %v321, 16
      %v327 = vshll.u32 %v321, 16
      %v329 = vrot.slane %v327, 1
      %v330 = vor.u32 %v325, %v329
      %v332 = vshll.u32 %v322, 16
      %v334 = vrot.slane %v332, 1
      %v335 = vsel %vm323, %v330, %v334
      %336 = vrot.lane.b32.xlu0 %v335, 4
      %v337 = vpop.permute.xlu0 %336
      %vm340 = vcmask 1046528
      %v341 = vrot.slane %v321, 1
      %v342 = vrot.slane %v322, 1
      %v343 = vsel %vm340, %v341, %v342
      %344 = vrot.lane.b32.xlu0 %v343, 8
      %v345 = vpop.permute.xlu0 %344
      %vm346 = vsmask.f32 6400
      %v347 = vrot.slane %v325, 1
      %v348 = vrot.slane %v327, 2
      %v349 = vor.u32 %v347, %v348
      %v350 = vshrl.u32 %v322, 16
      %v352 = vrot.slane %v350, 1
      %v353 = vrot.slane %v332, 2
      %v354 = vor.u32 %v352, %v353
      %v355 = vsel %vm346, %v349, %v354
      %356 = vrot.lane.b32.xlu0 %v355, 12
      %v357 = vpop.permute.xlu0 %356
      %vm358 = vcmask 1045504
      %v359 = vrot.slane %v321, 2
      %v360 = vrot.slane %v322, 2
      %v361 = vsel %vm358, %v359, %v360
      %362 = vrot.lane.b32.xlu0 %v361, 16
      %v363 = vpop.permute.xlu0 %362
      %vm364 = vcmask 31744
      %v366 = vsel %vm364, %v321, %v337
      %vm367 = vcmask 64512
      %v369 = vsel %vm367, %v366, %v345
      %vm370 = vcmask 97280
      %v372 = vsel %vm370, %v369, %v357
      %vm373 = vcmask 130048
      %v375 = vsel %vm373, %v372, %v363
      %v376 = vld [vmem:[%s1] sm:$0xf]
      %v377 = vld [vmem:[%s1 + $0x4] sm:$0xf]
      %v378 = vld [vmem:[%s1 + $0x8] sm:$0x3]
      %v379 = vld [vmem:[%s2] sm:$0x1]
      %v381 = vlaneseq
      %v382 = vshrl.u32 %v381, 7
      %v383 = vsub.s32 0, %v382
      %v384 = vrot.slane %v379, %v383
      %v389 = vunpack.c.l.b16 %v376
      %v390 = vunpack.c.l.b16 %v377
      %v391 = vunpack.c.l.b16 %v378
      %v392 = vpack.c.b16 %v390, %v389
      %v393 = vpack.c.b16 %v391, %v391
      %vm395 = vcmask 162816
      %v396 = vsel %vm395, %v375, 0
      %v399 = vsel %vm312, %v393, 0
      %401 = vmatprep.subr.bf16.mxu0 0
      %402 = vmatpush1.bf16.msra.mxu0 0
      %403 = vmatprep.subr.bf16.mxu0 0
      %404 = vmatpush1.bf16.msra.mxu0 0
      %405 = vmatprep.subr.bf16.mxu0 0
      %406 = vmatpush1.bf16.msra.mxu0 0
      %407 = vmatprep.subr.bf16.mxu0 0
      %408 = vmatpush1.bf16.msra.mxu0 0
      %409 = vmatprep.subr.bf16.mxu0 0
      %410 = vmatpush1.bf16.msra.mxu0 0
      %411 = vmatprep.subr.bf16.mxu0 0
      %412 = vmatpush1.bf16.msra.mxu0 0
      %413 = vmatprep.subr.bf16.mxu0 0
      %414 = vmatpush1.bf16.msra.mxu0 %v399
      %415 = vmatprep.subr.bf16.mxu0 0
      %416 = vmatpush1.bf16.msra.mxu0 %v392
      %417 = vmatprep.subr.bf16.mxu0 0
      %418 = vmatpush2.bf16.msra.mxu0 0
      %419 = vmatprep.subr.bf16.mxu0 0
      %420 = vmatpush2.bf16.msra.mxu0 0
      %421 = vmatprep.subr.bf16.mxu0 0
      %422 = vmatpush2.bf16.msra.mxu0 0
      %423 = vmatprep.subr.bf16.mxu0 0
      %424 = vmatpush2.bf16.msra.mxu0 0
      %425 = vmatprep.subr.bf16.mxu0 0
      %426 = vmatpush2.bf16.msra.mxu0 0
      %427 = vmatprep.subr.bf16.mxu0 0
      %428 = vmatpush2.bf16.msra.mxu0 0
      %429 = vmatprep.subr.bf16.mxu0 0
      %430 = vmatpush2.bf16.msra.mxu0 0
      %431 = vmatprep.subr.bf16.mxu0 0
      %432 = vmatpush2.bf16.msra.mxu0 0
      %433 = vmatprep.mubr.bf16.mxu0 0
      %434 = vmatmul.mubr.bf16.gmra.mxu0 %v396
      %v435 = vpop.f32.mrf.mxu0
      %v436 = vadd.f32 %v384, %v435
      %v437 = vpop.f32.mrf.mxu0
      %v438 = vpop.f32.mrf.mxu0
      %v439 = vadd.f32 %v384, %v438
      %v440 = vpop.f32.mrf.mxu0
      %441 = vdwg.mxu0
      %v442 = vmax.f32 %v436, 0.0
      %v443 = vmax.f32 %v439, 0.0
      %v446 = vcombine.high %v442, %v442
      %v448 = vunpack.c.l.s4 1983009808
      %v449 = vunpack.c.0.s8 %v448
      %v450 = vlaneseq
      %v451 = vshrl.u32 %v450, 7
      %v452 = vsub.s32 %v449, %v451
      %v453 = vrot.slane %v442, %v452
      %v455 = vunpack.c.l.s4 1983009808
      %v456 = vunpack.c.0.s8 %v455
      %v457 = vlaneseq
      %v458 = vshrl.u32 %v457, 7
      %v459 = vsub.s32 %v456, %v458
      %v460 = vrot.slane %v446, %v459
      %v461 = vcombine.high %v453, %v453
      %v462 = vcombine.high %v460, %v460
      %v463 = vcombine.high %v443, %v443
      %v465 = vunpack.c.l.s4 1983009808
      %v466 = vunpack.c.0.s8 %v465
      %v467 = vlaneseq
      %v468 = vshrl.u32 %v467, 7
      %v469 = vsub.s32 %v466, %v468
      %v470 = vrot.slane %v443, %v469
      %v472 = vunpack.c.l.s4 1983009808
      %v473 = vunpack.c.0.s8 %v472
      %v474 = vlaneseq
      %v475 = vshrl.u32 %v474, 7
      %v476 = vsub.s32 %v473, %v475
      %v477 = vrot.slane %v463, %v476
      %v478 = vcombine.high %v470, %v470
      %v479 = vcombine.high %v477, %v477
      %vm488 = vcmask 58368
      %v489 = vsel %vm488, %v453, -inf
      %v490 = vrot.slane %v489, 4
      %v491 = vmax.f32 %v489, %v490
      %v492 = vrot.slane %v491, 2
      %v493 = vmax.f32 %v491, %v492
      %v494 = vrot.slane %v493, 1
      %v495 = vmax.f32 %v493, %v494
      %v496 = vsel %vm488, %v461, -inf
      %v497 = vrot.slane %v496, 4
      %v498 = vmax.f32 %v496, %v497
      %v499 = vrot.slane %v498, 2
      %v500 = vmax.f32 %v498, %v499
      %v501 = vrot.slane %v500, 1
      %v502 = vmax.f32 %v500, %v501
      %v503 = vsel %vm488, %v460, -inf
      %v504 = vrot.slane %v503, 4
      %v505 = vmax.f32 %v503, %v504
      %v506 = vrot.slane %v505, 2
      %v507 = vmax.f32 %v505, %v506
      %v508 = vrot.slane %v507, 1
      %v509 = vmax.f32 %v507, %v508
      %v510 = vsel %vm488, %v462, -inf
      %v511 = vrot.slane %v510, 4
      %v512 = vmax.f32 %v510, %v511
      %v513 = vrot.slane %v512, 2
      %v514 = vmax.f32 %v512, %v513
      %v515 = vrot.slane %v514, 1
      %v516 = vmax.f32 %v514, %v515
      %v517 = vsel %vm488, %v470, -inf
      %v518 = vrot.slane %v517, 4
      %v519 = vmax.f32 %v517, %v518
      %v520 = vrot.slane %v519, 2
      %v521 = vmax.f32 %v519, %v520
      %v522 = vrot.slane %v521, 1
      %v523 = vmax.f32 %v521, %v522
      %v524 = vsel %vm488, %v478, -inf
      %v525 = vrot.slane %v524, 4
      %v526 = vmax.f32 %v524, %v525
      %v527 = vrot.slane %v526, 2
      %v528 = vmax.f32 %v526, %v527
      %v529 = vrot.slane %v528, 1
      %v530 = vmax.f32 %v528, %v529
      %v531 = vsel %vm488, %v477, -inf
      %v532 = vrot.slane %v531, 4
      %v533 = vmax.f32 %v531, %v532
      %v534 = vrot.slane %v533, 2
      %v535 = vmax.f32 %v533, %v534
      %v536 = vrot.slane %v535, 1
      %v537 = vmax.f32 %v535, %v536
      %v538 = vsel %vm488, %v479, -inf
      %v539 = vrot.slane %v538, 4
      %v540 = vmax.f32 %v538, %v539
      %v541 = vrot.slane %v540, 2
      %v542 = vmax.f32 %v540, %v541
      %v543 = vrot.slane %v542, 1
      %v544 = vmax.f32 %v542, %v543
      %vm553 = vcmask 1043459
      %v554 = vsel %vm553, %v502, %v495
      %vm555 = vcmask 1044484
      %v556 = vsel %vm555, %v509, %v554
      %vm557 = vcmask 1045509
      %v558 = vsel %vm557, %v516, %v556
      %vm559 = vcmask 1046534
      %v560 = vsel %vm559, %v523, %v558
      %vm561 = vcmask 1047559
      %v562 = vsel %vm561, %v530, %v560
      %vm563 = vcmask 1041409
      %v564 = vsel %vm563, %v544, %v537
      %v567 = vsel %vm312, 0.0, %v562
      %v568 = vsel %vm312, %v564, 0.0
      %v569 = vpack.c.bf16 %v567, %v567
      %v570 = vpack.c.bf16 %v568, %v567
      %v572 = vshrl.u32 %v570, 16
      %v574 = vshll.u32 %v570, 16
      %v576 = vrot.slane %v574, 1
      %v577 = vor.u32 %v572, %v576
      %578 = vrot.lane.b32.xlu0 %v577, 8
      %v579 = vpop.permute.xlu0 %578
      %v581 = vrot.slane %v570, 1
      %582 = vrot.lane.b32.xlu0 %v581, 16
      %v583 = vpop.permute.xlu0 %582
      %v584 = vrot.slane %v572, 1
      %v585 = vrot.slane %v574, 2
      %v586 = vor.u32 %v584, %v585
      %587 = vrot.lane.b32.xlu0 %v586, 24
      %v588 = vpop.permute.xlu0 %587
      %v589 = vrot.slane %v570, 2
      %590 = vrot.lane.b32.xlu0 %v589, 32
      %v591 = vpop.permute.xlu0 %590
      %v594 = vsel %vm367, %v569, %v579
      %v596 = vsel %vm373, %v594, %v583
      %vm597 = vcmask 195584
      %v599 = vsel %vm597, %v596, %v588
      %vm600 = vcmask 261120
      %v602 = vsel %vm600, %v599, %v591
      %v603 = vld [vmem:[%s3] sm:$0xf]
      %v604 = vld [vmem:[%s3 + $0x4] sm:$0xf]
      %v605 = vld [vmem:[%s3 + $0x8] sm:$0xf]
      %v606 = vld [vmem:[%s3 + $0xc] sm:$0xf]
      %v607 = vld [vmem:[%s3 + $0x10] sm:$0xf]
      %v608 = vld [vmem:[%s4] sm:$0x1]
      %v610 = vlaneseq
      %v611 = vshrl.u32 %v610, 7
      %v612 = vsub.s32 0, %v611
      %v613 = vrot.slane %v608, %v612
      %v620 = vunpack.c.l.b16 %v603
      %v621 = vunpack.c.l.b16 %v604
      %v622 = vunpack.c.l.b16 %v605
      %v623 = vunpack.c.l.b16 %v606
      %v624 = vunpack.c.l.b16 %v607
      %v625 = vpack.c.b16 %v621, %v620
      %v626 = vpack.c.b16 %v623, %v622
      %v627 = vpack.c.b16 %v624, %v624
      %vm630 = vcmask 326656
      %v631 = vsel %vm630, %v602, 0
      %vm633 = vcmask 1043456
      %v635 = vsel %vm633, %v627, 0
      %637 = vmatprep.subr.bf16.mxu0 0
      %638 = vmatpush1.bf16.msra.mxu0 0
      %639 = vmatprep.subr.bf16.mxu0 0
      %640 = vmatpush1.bf16.msra.mxu0 0
      %641 = vmatprep.subr.bf16.mxu0 0
      %642 = vmatpush1.bf16.msra.mxu0 0
      %643 = vmatprep.subr.bf16.mxu0 0
      %644 = vmatpush1.bf16.msra.mxu0 0
      %645 = vmatprep.subr.bf16.mxu0 0
      %646 = vmatpush1.bf16.msra.mxu0 0
      %647 = vmatprep.subr.bf16.mxu0 0
      %648 = vmatpush1.bf16.msra.mxu0 %v635
      %649 = vmatprep.subr.bf16.mxu0 0
      %650 = vmatpush1.bf16.msra.mxu0 %v626
      %651 = vmatprep.subr.bf16.mxu0 0
      %652 = vmatpush1.bf16.msra.mxu0 %v625
      %653 = vmatprep.subr.bf16.mxu0 0
      %654 = vmatpush2.bf16.msra.mxu0 0
      %655 = vmatprep.subr.bf16.mxu0 0
      %656 = vmatpush2.bf16.msra.mxu0 0
      %657 = vmatprep.subr.bf16.mxu0 0
      %658 = vmatpush2.bf16.msra.mxu0 0
      %659 = vmatprep.subr.bf16.mxu0 0
      %660 = vmatpush2.bf16.msra.mxu0 0
      %661 = vmatprep.subr.bf16.mxu0 0
      %662 = vmatpush2.bf16.msra.mxu0 0
      %663 = vmatprep.subr.bf16.mxu0 0
      %664 = vmatpush2.bf16.msra.mxu0 0
      %665 = vmatprep.subr.bf16.mxu0 0
      %666 = vmatpush2.bf16.msra.mxu0 0
      %667 = vmatprep.subr.bf16.mxu0 0
      %668 = vmatpush2.bf16.msra.mxu0 0
      %669 = vmatprep.mubr.bf16.mxu0 0
      %670 = vmatmul.mubr.bf16.gmra.mxu0 %v631
      %v671 = vpop.f32.mrf.mxu0
      %v672 = vadd.f32 %v613, %v671
      %v673 = vpop.f32.mrf.mxu0
      %v674 = vpop.f32.mrf.mxu0
      %v675 = vpop.f32.mrf.mxu0
      %676 = vdwg.mxu0
      %v677 = vmax.f32 %v672, 0.0
      %v679 = vcombine.high %v677, %v677
      %v681 = vunpack.c.l.s4 1983009808
      %v682 = vunpack.c.0.s8 %v681
      %v683 = vlaneseq
      %v684 = vshrl.u32 %v683, 7
      %v685 = vsub.s32 %v682, %v684
      %v686 = vrot.slane %v677, %v685
      %v688 = vunpack.c.l.s4 1983009808
      %v689 = vunpack.c.0.s8 %v688
      %v690 = vlaneseq
      %v691 = vshrl.u32 %v690, 7
      %v692 = vsub.s32 %v689, %v691
      %v693 = vrot.slane %v679, %v692
      %v694 = vcombine.high %v686, %v686
      %v695 = vcombine.high %v693, %v693
      %vm700 = vcmask 123904
      %v701 = vsel %vm700, %v686, -inf
      %v702 = vrot.slane %v701, 4
      %v703 = vmax.f32 %v701, %v702
      %v704 = vrot.slane %v703, 2
      %v705 = vmax.f32 %v703, %v704
      %v706 = vrot.slane %v705, 1
      %v707 = vmax.f32 %v705, %v706
      %v708 = vsel %vm700, %v694, -inf
      %v709 = vrot.slane %v708, 4
      %v710 = vmax.f32 %v708, %v709
      %v711 = vrot.slane %v710, 2
      %v712 = vmax.f32 %v710, %v711
      %v713 = vrot.slane %v712, 1
      %v714 = vmax.f32 %v712, %v713
      %v715 = vsel %vm700, %v693, -inf
      %v716 = vrot.slane %v715, 4
      %v717 = vmax.f32 %v715, %v716
      %v718 = vrot.slane %v717, 2
      %v719 = vmax.f32 %v717, %v718
      %v720 = vrot.slane %v719, 1
      %v721 = vmax.f32 %v719, %v720
      %v722 = vsel %vm700, %v695, -inf
      %v723 = vrot.slane %v722, 4
      %v724 = vmax.f32 %v722, %v723
      %v725 = vrot.slane %v724, 2
      %v726 = vmax.f32 %v724, %v725
      %v727 = vrot.slane %v726, 1
      %v728 = vmax.f32 %v726, %v727
      %v733 = vsel %vm553, %v714, %v707
      %v734 = vsel %vm555, %v721, %v733
      %v735 = vsel %vm557, %v728, %v734
      %v737 = vsel %vm312, 0.0, %v735
      %vm738 = vcmask 1045504
      %v739 = vsel %vm738, %v737, 0.0
      %v740 = vpack.c.bf16 %v739, %v739
      %v742 = vshrl.u32 %v740, 16
      %v744 = vshll.u32 %v740, 16
      %v746 = vrot.slane %v744, 1
      %v747 = vor.u32 %v742, %v746
      %748 = vrot.lane.b32.xlu0 %v747, 16
      %v749 = vpop.permute.xlu0 %748
      %v751 = vrot.slane %v740, 1
      %752 = vrot.lane.b32.xlu0 %v751, 32
      %v753 = vpop.permute.xlu0 %752
      %v754 = vrot.slane %v742, 1
      %v755 = vrot.slane %v744, 2
      %v756 = vor.u32 %v754, %v755
      %757 = vrot.lane.b32.xlu0 %v756, 48
      %v758 = vpop.permute.xlu0 %757
      %v759 = vrot.slane %v740, 2
      %760 = vrot.lane.b32.xlu0 %v759, 64
      %v761 = vpop.permute.xlu0 %760
      %v763 = vsel %vm373, %v740, %v749
      %v765 = vsel %vm600, %v763, %v753
      %vm766 = vcmask 392192
      %v768 = vsel %vm766, %v765, %v758
      %vm769 = vcmask 523264
      %v771 = vsel %vm769, %v768, %v761
      %v772 = vld [vmem:[%s5] sm:$0xf]
      %v773 = vld [vmem:[%s5 + $0x4] sm:$0xf]
      %v774 = vld [vmem:[%s5 + $0x8] sm:$0xf]
      %v775 = vld [vmem:[%s5 + $0xc] sm:$0xf]
      %v776 = vld [vmem:[%s5 + $0x10] sm:$0xf]
      %v777 = vld [vmem:[%s5 + $0x14] sm:$0xf]
      %v778 = vld [vmem:[%s5 + $0x18] sm:$0xf]
      %v779 = vld [vmem:[%s5 + $0x1c] sm:$0xf]
      %v780 = vld [vmem:[%s5 + $0x20] sm:$0xf]
      %v781 = vld [vmem:[%s5 + $0x24] sm:$0xf]
      %v782 = vld [vmem:[%s6] sm:$0x1]
      %v784 = vlaneseq
      %v785 = vshrl.u32 %v784, 7
      %v786 = vsub.s32 0, %v785
      %v787 = vrot.slane %v782, %v786
      %v799 = vunpack.c.l.b16 %v772
      %v800 = vunpack.c.l.b16 %v773
      %v801 = vunpack.c.l.b16 %v774
      %v802 = vunpack.c.l.b16 %v775
      %v803 = vunpack.c.l.b16 %v776
      %v804 = vunpack.c.l.b16 %v777
      %v805 = vunpack.c.l.b16 %v778
      %v806 = vunpack.c.l.b16 %v779
      %v807 = vunpack.c.l.b16 %v780
      %v808 = vunpack.c.l.b16 %v781
      %v809 = vpack.c.b16 %v800, %v799
      %v810 = vpack.c.b16 %v802, %v801
      %v811 = vpack.c.b16 %v804, %v803
      %v812 = vpack.c.b16 %v806, %v805
      %v813 = vpack.c.b16 %v808, %v807
      %vm819 = vcmask 654336
      %v820 = vsel %vm819, %v771, 0
      %822 = vmatprep.subr.bf16.mxu0 0
      %823 = vmatpush1.bf16.msra.mxu0 0
      %824 = vmatprep.subr.bf16.mxu0 0
      %825 = vmatpush1.bf16.msra.mxu0 0
      %826 = vmatprep.subr.bf16.mxu0 0
      %827 = vmatpush1.bf16.msra.mxu0 0
      %828 = vmatprep.subr.bf16.mxu0 0
      %829 = vmatpush1.bf16.msra.mxu0 %v813
      %830 = vmatprep.subr.bf16.mxu0 0
      %831 = vmatpush1.bf16.msra.mxu0 %v812
      %832 = vmatprep.subr.bf16.mxu0 0
      %833 = vmatpush1.bf16.msra.mxu0 %v811
      %834 = vmatprep.subr.bf16.mxu0 0
      %835 = vmatpush1.bf16.msra.mxu0 %v810
      %836 = vmatprep.subr.bf16.mxu0 0
      %837 = vmatpush1.bf16.msra.mxu0 %v809
      %838 = vmatprep.subr.bf16.mxu0 0
      %839 = vmatpush2.bf16.msra.mxu0 0
      %840 = vmatprep.subr.bf16.mxu0 0
      %841 = vmatpush2.bf16.msra.mxu0 0
      %842 = vmatprep.subr.bf16.mxu0 0
      %843 = vmatpush2.bf16.msra.mxu0 0
      %844 = vmatprep.subr.bf16.mxu0 0
      %845 = vmatpush2.bf16.msra.mxu0 0
      %846 = vmatprep.subr.bf16.mxu0 0
      %847 = vmatpush2.bf16.msra.mxu0 0
      %848 = vmatprep.subr.bf16.mxu0 0
      %849 = vmatpush2.bf16.msra.mxu0 0
      %850 = vmatprep.subr.bf16.mxu0 0
      %851 = vmatpush2.bf16.msra.mxu0 0
      %852 = vmatprep.subr.bf16.mxu0 0
      %853 = vmatpush2.bf16.msra.mxu0 0
      %854 = vmatprep.mubr.bf16.mxu0 0
      %855 = vmatmul.mubr.bf16.gmra.mxu0 %v820
      %v856 = vpop.f32.mrf.mxu0
      %v857 = vadd.f32 %v787, %v856
      %v858 = vpop.f32.mrf.mxu0
      %v859 = vpop.f32.mrf.mxu0
      %v860 = vpop.f32.mrf.mxu0
      %861 = vdwg.mxu0
      %v862 = vmax.f32 %v857, 0.0
      %v865 = vunpack.c.l.s4 1983009808
      %v866 = vunpack.c.0.s8 %v865
      %v867 = vlaneseq
      %v868 = vshrl.u32 %v867, 7
      %v869 = vsub.s32 %v866, %v868
      %v870 = vrot.slane %v862, %v869
      %v871 = vcombine.high %v870, %v870
      %vm874 = vcmask 254976
      %v875 = vsel %vm874, %v870, -inf
      %v876 = vrot.slane %v875, 4
      %v877 = vmax.f32 %v875, %v876
      %v878 = vrot.slane %v877, 2
      %v879 = vmax.f32 %v877, %v878
      %v880 = vrot.slane %v879, 1
      %v881 = vmax.f32 %v879, %v880
      %v882 = vsel %vm874, %v871, -inf
      %v883 = vrot.slane %v882, 4
      %v884 = vmax.f32 %v882, %v883
      %v885 = vrot.slane %v884, 2
      %v886 = vmax.f32 %v884, %v885
      %v887 = vrot.slane %v886, 1
      %v888 = vmax.f32 %v886, %v887
      %v891 = vsel %vm563, %v888, %v881
      %893 = vxpose.xlu0.b32.start [1/16] %v891, 128
      %894 = vxpose.xlu0.b32.cont [2/16] 0.0, 128
      %895 = vxpose.xlu0.b32.cont [3/16] 0.0, 128
      %896 = vxpose.xlu0.b32.cont [4/16] 0.0, 128
      %897 = vxpose.xlu0.b32.cont [5/16] 0.0, 128
      %898 = vxpose.xlu0.b32.cont [6/16] 0.0, 128
      %899 = vxpose.xlu0.b32.cont [7/16] 0.0, 128
      %900 = vxpose.xlu0.b32.cont [8/16] 0.0, 128
      %901 = vxpose.xlu0.b32.cont [9/16] 0.0, 128
      %902 = vxpose.xlu0.b32.cont [10/16] 0.0, 128
      %903 = vxpose.xlu0.b32.cont [11/16] 0.0, 128
      %904 = vxpose.xlu0.b32.cont [12/16] 0.0, 128
      %905 = vxpose.xlu0.b32.cont [13/16] 0.0, 128
      %906 = vxpose.xlu0.b32.cont [14/16] 0.0, 128
      %907 = vxpose.xlu0.b32.cont [15/16] 0.0, 128
      %908 = vxpose.xlu0.b32.end [16/16] 0.0, 128
      %v909 = vpop.trf.xlu0
      %v910 = vpop.trf.xlu0
      %v911 = vpop.trf.xlu0
      %v912 = vpop.trf.xlu0
      %v913 = vpop.trf.xlu0
      %v914 = vpop.trf.xlu0
      %v915 = vpop.trf.xlu0
      %v916 = vpop.trf.xlu0
      %v917 = vpop.trf.xlu0
      %v918 = vpop.trf.xlu0
      %v919 = vpop.trf.xlu0
      %v920 = vpop.trf.xlu0
      %v921 = vpop.trf.xlu0
      %v922 = vpop.trf.xlu0
      %v923 = vpop.trf.xlu0
      %v924 = vpop.trf.xlu0
      %vm925 = vcmask 15360
      %926 = vst.msk [vmem:[%s275] sm:$0xff] %vm925, %v909
      %927 = vst.msk [vmem:[%s275 + $0x8] sm:$0xff] %vm925, %v910
      %928 = vst.msk [vmem:[%s275 + $0x10] sm:$0xff] %vm925, %v911
      %929 = vst.msk [vmem:[%s275 + $0x18] sm:$0xff] %vm925, %v912
      %p930 = scmp.lt.s32.totalorder %s18, 1
      %s931 = scalar_select %p930, %s18, 1
      %s932 = smul.addr %s931, 4
      %s933 = smul.addr %s932, 8
      %s934 = scalar_lea.vmem %s7, %s933
      // Predicated region
      $region49: #{tpu_custom_call.1} parent=47 // pred_check
        %p935 = pneg %p188
      $region50: #{tpu_custom_call.1} parent=47 // pred_check_branch
        %937 = sbr.rel (%p935) target = $region52
      $region51: #{tpu_custom_call.1} parent=47 // pred_region
        _
      $region52: #{tpu_custom_call.1} parent=47 // pred_fallthru
        _
    $region48: #{tpu_custom_call.1} parent=5 // pred_fallthru
      _
    %p938 = scmp.le.s32.totalorder 2, %s13
    // Predicated region
    $region53: #{tpu_custom_call.1} parent=5 // pred_check
      %p939 = pneg %p938
    $region54: #{tpu_custom_call.1} parent=5 // pred_check_branch
      %941 = sbr.rel (%p939) target = $region56
    $region55: #{tpu_custom_call.1} parent=5 // pred_region
      %s942 = ssub.s32 %s13, 2
      // Predicated region
      $region57: #{tpu_custom_call.1} parent=55 // pred_check
        %p943 = pneg %p194
      $region58: #{tpu_custom_call.1} parent=55 // pred_check_branch
        %945 = sbr.rel (%p943) target = $region60
      $region59: #{tpu_custom_call.1} parent=55 // pred_region
        %p946 = scmp.lt.s32.totalorder %s19, 1
        %s947 = scalar_select %p946, %s19, 1
        %s948 = smul.addr %s947, 4
        %s949 = smul.addr %s948, 8
        %s950 = scalar_lea.vmem %s7, %s949
      $region60: #{tpu_custom_call.1} parent=55 // pred_fallthru
        _
    $region56: #{tpu_custom_call.1} parent=5 // pred_fallthru
      _
  $region6: #{tpu_custom_call.1} parent=0 // loop_footer
    %s17 = sadd.s32 1, %s13
  $region7: #{tpu_custom_call.1} parent=0 // loop_footer_branch
    %12 = sbr.rel target = $region3
  $region8: #{tpu_custom_call.1} parent=0 // loop_exit
    _

</llo_original>
